<compile_context>
chip_gen: v7x
topology: tpu7x:2x2x1
jax: 0.10.0
libtpu: 0.0.40
codegen_flags: <defaults>
</compile_context>

<pallas_src>
import jax
import jax.numpy as jnp
from jax.experimental import pallas as pl
from jax.experimental.pallas import tpu as pltpu

# model sizes (synthetic, consistent with a small CICIDS-style encoder)
B, C, H, W = 2, 4, 16, 16     # input NCHW
F = 8                         # conv output channels
E = 32                        # embedding dim
NC = 5                        # number of in-domain classes
THRESHOLD = 1.0               # "fitted" outlier_detector.threshold_

HW = H * W                    # spatial positions per sample (256, 8-aligned)
LANES = 128                   # vreg lane width: every matmul N/K dim padded to this
K = C * 9                     # im2col contraction dim (flat index = c*9 + kh*3 + kw)

# packed parameter buffer layout (rows; all 128 lanes wide; f32)
ROW_CONV_W = 0                         # [128, 128]  conv weight (rows >= K, cols >= F zero)
ROW_MISC   = ROW_CONV_W + LANES        # [8, 128]    conv_b / b1 / b2 / center / thresh
ROW_W1     = ROW_MISC + 8              # [128, 128]  fc1 * (1/HW) (rows >= F, cols >= E zero)
ROW_W2     = ROW_W1 + LANES            # [128, 128]  fc2 (rows >= E, cols >= NC zero)
PACK_ROWS  = ROW_W2 + LANES            # 392 rows total (multiple of 8)


def _ood_kernel(patches_ref, params_ref, out_ref):
    patches = patches_ref[...]                             # [B*HW, 128] bf16, lane-dense

    # static, sublane-aligned slices of the single packed parameter buffer
    conv_w = params_ref[ROW_CONV_W:ROW_CONV_W + LANES, :]  # [128, 128] f32
    misc   = params_ref[ROW_MISC:ROW_MISC + 8, :]          # [8, 128]
    w1     = params_ref[ROW_W1:ROW_W1 + LANES, :]          # [128, 128]
    w2     = params_ref[ROW_W2:ROW_W2 + LANES, :]          # [128, 128]
    conv_b = misc[0:1, :]
    b1     = misc[1:2, :]
    b2     = misc[2:3, :]
    center = misc[3:4, :]
    thresh = misc[4:5, 0:1]                                # [1, 1]

    # conv 3x3 (stride 1, pad 1) as patches @ weight -> MXU, bf16 operands, f32 acc
    h = jnp.dot(patches, conv_w.astype(jnp.bfloat16),
                preferred_element_type=jnp.float32) + conv_b
    h = jnp.maximum(h, 0.0)                                # [B*HW, 128] f32, cols >= F are 0

    # global average pool: layout-preserving reshape (HW is 8-aligned) + sublane
    # reduce; the 1/HW mean scale is folded into w1 at pack_params time.
    pooled = jnp.sum(h.reshape(B, HW, LANES), axis=1)      # [B, 128] f32

    # embedding head (return_q=True branch of the encoder)
    emb = jnp.dot(pooled.astype(jnp.bfloat16), w1.astype(jnp.bfloat16),
                  preferred_element_type=jnp.float32) + b1
    emb = jnp.maximum(emb, 0.0)                            # [B, 128], cols >= E are 0

    # classifier head -> logits (padded class lanes are exactly 0 here)
    logits = jnp.dot(emb.astype(jnp.bfloat16), w2.astype(jnp.bfloat16),
                     preferred_element_type=jnp.float32) + b2   # [B, 128]

    # OOD score: squared distance of embedding to fitted centroid vs. threshold_
    diff = emb - center                                    # padded lanes: 0 - 0
    score = jnp.sum(diff * diff, axis=-1, keepdims=True)   # [B, 1]
    pred = (score > thresh).astype(jnp.int32)              # 1 = OOD, 0 = in-domain

    # argmax over the real NC classes (first occurrence, matches np.argmax)
    lane = jax.lax.broadcasted_iota(jnp.int32, logits.shape, 1)
    masked = jnp.where(lane < NC, logits, -jnp.inf)        # padded lanes can never win
    max_val = jnp.max(masked, axis=-1, keepdims=True)
    cand = jnp.where(masked == max_val, lane, LANES)
    cls = jnp.min(cand, axis=-1, keepdims=True)            # [B, 1]
    cls = jnp.where(cls >= NC, 0, cls)                     # NaN-logit fallback: in-range class
    cls = jnp.where(pred == 1, jnp.int32(-1), cls)         # OOD samples -> -1

    # lane-dense packed output: lane 0 = pred, lane 1 = cls, rest 0
    col = jax.lax.broadcasted_iota(jnp.int32, (B, LANES), 1)
    out_ref[...] = jnp.where(col == 0, pred, jnp.where(col == 1, cls, 0))


def make_params(key):
    ks = jax.random.split(key, 6)
    return {
        "conv_w": 0.1 * jax.random.normal(ks[0], (K, F), jnp.float32),
        "conv_b": 0.05 * jax.random.normal(ks[1], (1, F), jnp.float32),
        "w1": 0.1 * jax.random.normal(ks[2], (F, E), jnp.float32),
        "b1": 0.05 * jax.random.normal(ks[3], (1, E), jnp.float32),
        "w2": 0.1 * jax.random.normal(ks[4], (E, NC), jnp.float32),
        "b2": 0.05 * jax.random.normal(ks[5], (1, NC), jnp.float32),
        # "fitted" detector state
        "center": jnp.zeros((1, E), jnp.float32),
        "thresh": jnp.full((1, 1), THRESHOLD, jnp.float32),
    }


def pack_params(p):
    """Pack all parameters + threshold once into a single lane-dense buffer."""
    buf = jnp.zeros((PACK_ROWS, LANES), jnp.float32)
    buf = buf.at[ROW_CONV_W:ROW_CONV_W + K, 0:F].set(p["conv_w"])
    buf = buf.at[ROW_MISC + 0, 0:F].set(p["conv_b"][0])
    buf = buf.at[ROW_MISC + 1, 0:E].set(p["b1"][0])
    buf = buf.at[ROW_MISC + 2, 0:NC].set(p["b2"][0])
    buf = buf.at[ROW_MISC + 3, 0:E].set(p["center"][0])
    buf = buf.at[ROW_MISC + 4, 0].set(p["thresh"][0, 0])
    # fold the global-average-pool 1/HW scale into w1 (kernel then only sums)
    buf = buf.at[ROW_W1:ROW_W1 + F, 0:E].set(p["w1"] * (1.0 / HW))
    buf = buf.at[ROW_W2:ROW_W2 + E, 0:NC].set(p["w2"])
    return buf


@jax.jit
def ood_classifier_forward(x, packed_params):
    """Pallas implementation of ConfigurableOODClassifier.forward.

    Returns (pred_labels [B] int32, cls_preds [B] int32): pred_labels is 1 for
    OOD / 0 for in-domain; cls_preds is argmax(logits) or -1 for OOD samples.
    """
    b = x.shape[0]
    # one-op patch extraction: output channels ordered c*9 + kh*3 + kw, NHWC out
    patches = jax.lax.conv_general_dilated_patches(
        x.astype(jnp.float32), filter_shape=(3, 3), window_strides=(1, 1),
        padding="SAME", dimension_numbers=("NCHW", "OIHW", "NHWC"))
    patches = patches.reshape(b * H * W, K)
    # lane-dense operand: pad contraction dim straight to 128 lanes, ship bf16
    patches = jnp.pad(patches, ((0, 0), (0, LANES - K))).astype(jnp.bfloat16)

    flops = 2 * (b * HW) * LANES * LANES + 2 * (2 * b * LANES * LANES)
    bytes_accessed = (b * HW * LANES * 2          # patches (bf16)
                      + PACK_ROWS * LANES * 4     # packed params (f32)
                      + b * LANES * 4)            # packed int32 output

    vmem = pltpu.MemorySpace.VMEM
    out = pl.pallas_call(
        _ood_kernel,
        out_shape=jax.ShapeDtypeStruct((b, LANES), jnp.int32),
        in_specs=[pl.BlockSpec(memory_space=vmem),
                  pl.BlockSpec(memory_space=vmem)],
        out_specs=pl.BlockSpec(memory_space=vmem),
        cost_estimate=pl.CostEstimate(flops=flops, transcendentals=0,
                                      bytes_accessed=bytes_accessed),
    )(patches, packed_params)

    return out[:, 0], out[:, 1]


if __name__ == "__main__":
    key = jax.random.PRNGKey(0)
    k_x, k_p = jax.random.split(key)
    x = jax.random.normal(k_x, (B, C, H, W), jnp.float32)      # NCHW like PyTorch
    params = make_params(k_p)
    packed = pack_params(params)                               # one-time packing ("fitted" state)

    pred_labels, cls_preds = ood_classifier_forward(x, packed)
    jax.block_until_ready((pred_labels, cls_preds))

    # mirror the module's return type: (pred_labels.tolist(), cls_preds.tolist())
    _result = (pred_labels.tolist(), cls_preds.tolist())
    assert len(_result[0]) == B and len(_result[1]) == B
    assert all(p in (0, 1) for p in _result[0])
    assert all(-1 <= c < NC for c in _result[1])

    print("KERNEL_OK")
</pallas_src>

<mosaic_0001>
module attributes {stable_mosaic.version = 11 : i64} {
  func.func @_ood_kernel(%arg0: memref<512x128xbf16, #tpu.memory_space<vmem>>, %arg1: memref<392x128xf32, #tpu.memory_space<vmem>>, %arg2: memref<2x128xi32, #tpu.memory_space<vmem>>) attributes {dimension_semantics = [], scalar_prefetch = 0 : i64, scratch_operands = 0 : i64, tpu.core_type = #tpu.core_type<tc>} {
    %c0 = arith.constant 0 : index
    %c0_0 = arith.constant 0 : index
    %0 = vector.load %arg0[%c0, %c0_0] : memref<512x128xbf16, #tpu.memory_space<vmem>>, vector<512x128xbf16>
    %c0_1 = arith.constant 0 : index
    %c0_2 = arith.constant 0 : index
    %1 = vector.load %arg1[%c0_1, %c0_2] : memref<392x128xf32, #tpu.memory_space<vmem>>, vector<128x128xf32>
    %c128 = arith.constant 128 : index
    %c0_3 = arith.constant 0 : index
    %2 = vector.load %arg1[%c128, %c0_3] : memref<392x128xf32, #tpu.memory_space<vmem>>, vector<8x128xf32>
    %c136 = arith.constant 136 : index
    %c0_4 = arith.constant 0 : index
    %3 = vector.load %arg1[%c136, %c0_4] : memref<392x128xf32, #tpu.memory_space<vmem>>, vector<128x128xf32>
    %c264 = arith.constant 264 : index
    %c0_5 = arith.constant 0 : index
    %4 = vector.load %arg1[%c264, %c0_5] : memref<392x128xf32, #tpu.memory_space<vmem>>, vector<128x128xf32>
    %5 = vector.extract_strided_slice %2 {offsets = [0, 0], sizes = [1, 128], strides = [1, 1]} : vector<8x128xf32> to vector<1x128xf32>
    %6 = vector.extract_strided_slice %2 {offsets = [1, 0], sizes = [1, 128], strides = [1, 1]} : vector<8x128xf32> to vector<1x128xf32>
    %7 = vector.extract_strided_slice %2 {offsets = [2, 0], sizes = [1, 128], strides = [1, 1]} : vector<8x128xf32> to vector<1x128xf32>
    %8 = vector.extract_strided_slice %2 {offsets = [3, 0], sizes = [1, 128], strides = [1, 1]} : vector<8x128xf32> to vector<1x128xf32>
    %9 = vector.extract_strided_slice %2 {offsets = [4, 0], sizes = [1, 1], strides = [1, 1]} : vector<8x128xf32> to vector<1x1xf32>
    %10 = arith.truncf %1 : vector<128x128xf32> to vector<128x128xbf16>
    %cst = arith.constant dense<0.000000e+00> : vector<512x128xf32>
    %11 = tpu.matmul %0, %10, %cst {dimension_numbers = #tpu.dot_dimension_numbers<[1], [0], [0], [1], [0, 0, 1, 1], [], []>} : vector<512x128xbf16>, vector<128x128xbf16>, vector<512x128xf32> -> vector<512x128xf32>
    %12 = vector.broadcast %5 : vector<1x128xf32> to vector<512x128xf32>
    %13 = arith.addf %11, %12 : vector<512x128xf32>
    %cst_6 = arith.constant 0.000000e+00 : f32
    %14 = vector.broadcast %cst_6 : f32 to vector<512x128xf32>
    %15 = arith.maximumf %13, %14 : vector<512x128xf32>
    %16 = vector.shape_cast %15 : vector<512x128xf32> to vector<2x256x128xf32>
    %cst_7 = arith.constant dense<0.000000e+00> : vector<2x128xf32>
    %17 = vector.multi_reduction <add>, %16, %cst_7 [1] : vector<2x256x128xf32> to vector<2x128xf32>
    %18 = arith.truncf %17 : vector<2x128xf32> to vector<2x128xbf16>
    %19 = arith.truncf %3 : vector<128x128xf32> to vector<128x128xbf16>
    %cst_8 = arith.constant dense<0.000000e+00> : vector<2x128xf32>
    %20 = tpu.matmul %18, %19, %cst_8 {dimension_numbers = #tpu.dot_dimension_numbers<[1], [0], [0], [1], [0, 0, 1, 1], [], []>} : vector<2x128xbf16>, vector<128x128xbf16>, vector<2x128xf32> -> vector<2x128xf32>
    %21 = vector.broadcast %6 : vector<1x128xf32> to vector<2x128xf32>
    %22 = arith.addf %20, %21 : vector<2x128xf32>
    %cst_9 = arith.constant 0.000000e+00 : f32
    %23 = vector.broadcast %cst_9 : f32 to vector<2x128xf32>
    %24 = arith.maximumf %22, %23 : vector<2x128xf32>
    %25 = arith.truncf %24 : vector<2x128xf32> to vector<2x128xbf16>
    %26 = arith.truncf %4 : vector<128x128xf32> to vector<128x128xbf16>
    %cst_10 = arith.constant dense<0.000000e+00> : vector<2x128xf32>
    %27 = tpu.matmul %25, %26, %cst_10 {dimension_numbers = #tpu.dot_dimension_numbers<[1], [0], [0], [1], [0, 0, 1, 1], [], []>} : vector<2x128xbf16>, vector<128x128xbf16>, vector<2x128xf32> -> vector<2x128xf32>
    %28 = vector.broadcast %7 : vector<1x128xf32> to vector<2x128xf32>
    %29 = arith.addf %27, %28 : vector<2x128xf32>
    %30 = vector.broadcast %8 : vector<1x128xf32> to vector<2x128xf32>
    %31 = arith.subf %24, %30 : vector<2x128xf32>
    %32 = arith.mulf %31, %31 : vector<2x128xf32>
    %cst_11 = arith.constant dense<0.000000e+00> : vector<2xf32>
    %33 = vector.multi_reduction <add>, %32, %cst_11 [1] : vector<2x128xf32> to vector<2xf32>
    %34 = vector.shape_cast %33 : vector<2xf32> to vector<2x1xf32>
    %35 = vector.broadcast %9 : vector<1x1xf32> to vector<2x1xf32>
    %36 = arith.cmpf ogt, %34, %35 : vector<2x1xf32>
    %37 = arith.extui %36 : vector<2x1xi1> to vector<2x1xi32>
    %38 = tpu.iota {dimensions = array<i32: 1>} : vector<2x128xi32>
    %c5_i32 = arith.constant 5 : i32
    %39 = vector.broadcast %c5_i32 : i32 to vector<2x128xi32>
    %40 = arith.cmpi slt, %38, %39 : vector<2x128xi32>
    %cst_12 = arith.constant 0xFF800000 : f32
    %41 = vector.broadcast %cst_12 : f32 to vector<2x128xf32>
    %42 = arith.select %40, %29, %41 : vector<2x128xi1>, vector<2x128xf32>
    %cst_13 = arith.constant dense<0xFF800000> : vector<2xf32>
    %43 = vector.multi_reduction <maximumf>, %42, %cst_13 [1] : vector<2x128xf32> to vector<2xf32>
    %44 = vector.shape_cast %43 : vector<2xf32> to vector<2x1xf32>
    %45 = vector.broadcast %44 : vector<2x1xf32> to vector<2x128xf32>
    %46 = arith.cmpf oeq, %42, %45 : vector<2x128xf32>
    %c128_i32 = arith.constant 128 : i32
    %47 = vector.broadcast %c128_i32 : i32 to vector<2x128xi32>
    %48 = arith.select %46, %38, %47 : vector<2x128xi1>, vector<2x128xi32>
    %cst_14 = arith.constant dense<2147483647> : vector<2xi32>
    %49 = vector.multi_reduction <minsi>, %48, %cst_14 [1] : vector<2x128xi32> to vector<2xi32>
    %50 = vector.shape_cast %49 : vector<2xi32> to vector<2x1xi32>
    %c5_i32_15 = arith.constant 5 : i32
    %51 = vector.broadcast %c5_i32_15 : i32 to vector<2x1xi32>
    %52 = arith.cmpi sge, %50, %51 : vector<2x1xi32>
    %c0_i32 = arith.constant 0 : i32
    %53 = vector.broadcast %c0_i32 : i32 to vector<2x1xi32>
    %54 = arith.select %52, %53, %50 : vector<2x1xi1>, vector<2x1xi32>
    %c1_i32 = arith.constant 1 : i32
    %55 = vector.broadcast %c1_i32 : i32 to vector<2x1xi32>
    %56 = arith.cmpi eq, %37, %55 : vector<2x1xi32>
    %c-1_i32 = arith.constant -1 : i32
    %57 = vector.broadcast %c-1_i32 : i32 to vector<2x1xi32>
    %58 = arith.select %56, %57, %54 : vector<2x1xi1>, vector<2x1xi32>
    %59 = tpu.iota {dimensions = array<i32: 1>} : vector<2x128xi32>
    %c0_i32_16 = arith.constant 0 : i32
    %60 = vector.broadcast %c0_i32_16 : i32 to vector<2x128xi32>
    %61 = arith.cmpi eq, %59, %60 : vector<2x128xi32>
    %c1_i32_17 = arith.constant 1 : i32
    %62 = vector.broadcast %c1_i32_17 : i32 to vector<2x128xi32>
    %63 = arith.cmpi eq, %59, %62 : vector<2x128xi32>
    %c0_i32_18 = arith.constant 0 : i32
    %64 = vector.shape_cast %58 : vector<2x1xi32> to vector<2x1xi32>
    %65 = vector.broadcast %64 : vector<2x1xi32> to vector<2x128xi32>
    %66 = vector.broadcast %c0_i32_18 : i32 to vector<2x128xi32>
    %67 = arith.select %63, %65, %66 : vector<2x128xi1>, vector<2x128xi32>
    %68 = vector.shape_cast %37 : vector<2x1xi32> to vector<2x1xi32>
    %69 = vector.broadcast %68 : vector<2x1xi32> to vector<2x128xi32>
    %70 = arith.select %61, %69, %67 : vector<2x128xi1>, vector<2x128xi32>
    %c0_19 = arith.constant 0 : index
    %c0_20 = arith.constant 0 : index
    %71 = vector.load %arg2[%c0_19, %c0_20] : memref<2x128xi32, #tpu.memory_space<vmem>>, vector<2x128xi32>
    tpu.vector_store %arg2[%c0_19, %c0_20], %70 {strides = array<i32>} : memref<2x128xi32, #tpu.memory_space<vmem>>, vector<2x128xi32>,
    return
  }
}

</mosaic_0001>

<llo_original>
// kernel: ood_classifier_forward.1
$region0: #{ood_classifier_forward.1}
  #allocation0 [shape = 'u32[]', space=smem, size = 0x4, offset = 0x4, fixed_abs, tag = 'smem constant byte address 0x4 - core index']
  #allocation1 [shape = 'u32[144,128]{1,0:T(1,128)}', space=vmem, size = 0x12000, scoped, tag = 'internal scratch']
  %s0 = inlined_call_operand.vmem [shape: bf16[512,128], index: 0, kind: input, shape index: {}]
  %s1 = inlined_call_operand.vmem [shape: f32[392,128], index: 1, kind: input, shape index: {}]
  %s2 = inlined_call_operand.vmem [shape: s32[2,128], index: 2, kind: output, shape index: {}]
  %s3 = sld [smem:[#allocation0]]
  $region18: #{ood_classifier_forward.1} parent=0
    _
  %s5 = ssub.s32 1, %s3
  %s6 = scalar_select 0, %s5, %s3
  // Predicated region
  $region2: #{ood_classifier_forward.1} parent=0 // pred_check
    _
  $region3: #{ood_classifier_forward.1} parent=0 // pred_check_branch
    %8 = sbr.rel (0) target = $region5
  $region4: #{ood_classifier_forward.1} parent=0 // pred_region
    _
  $region5: #{ood_classifier_forward.1} parent=0 // pred_fallthru
    _
  // Predicated region
  $region6: #{ood_classifier_forward.1} parent=0 // pred_check
    _
  $region7: #{ood_classifier_forward.1} parent=0 // pred_check_branch
    %10 = sbr.rel (0) target = $region9
  $region8: #{ood_classifier_forward.1} parent=0 // pred_region
    _
  $region9: #{ood_classifier_forward.1} parent=0 // pred_fallthru
    _
  %v12 = vld [vmem:[%s0] sm:$0xf]
  %v13 = vld [vmem:[%s0 + $0x4] sm:$0xf]
  %v14 = vld [vmem:[%s0 + $0x8] sm:$0xf]
  %v15 = vld [vmem:[%s0 + $0xc] sm:$0xf]
  %v16 = vld [vmem:[%s0 + $0x10] sm:$0xf]
  %v17 = vld [vmem:[%s0 + $0x14] sm:$0xf]
  %v18 = vld [vmem:[%s0 + $0x18] sm:$0xf]
  %v19 = vld [vmem:[%s0 + $0x1c] sm:$0xf]
  %v20 = vld [vmem:[%s0 + $0x20] sm:$0xf]
  %v21 = vld [vmem:[%s0 + $0x24] sm:$0xf]
  %v22 = vld [vmem:[%s0 + $0x28] sm:$0xf]
  %v23 = vld [vmem:[%s0 + $0x2c] sm:$0xf]
  %v24 = vld [vmem:[%s0 + $0x30] sm:$0xf]
  %v25 = vld [vmem:[%s0 + $0x34] sm:$0xf]
  %v26 = vld [vmem:[%s0 + $0x38] sm:$0xf]
  %v27 = vld [vmem:[%s0 + $0x3c] sm:$0xf]
  %v28 = vld [vmem:[%s0 + $0x40] sm:$0xf]
  %v29 = vld [vmem:[%s0 + $0x44] sm:$0xf]
  %v30 = vld [vmem:[%s0 + $0x48] sm:$0xf]
  %v31 = vld [vmem:[%s0 + $0x4c] sm:$0xf]
  %v32 = vld [vmem:[%s0 + $0x50] sm:$0xf]
  %v33 = vld [vmem:[%s0 + $0x54] sm:$0xf]
  %v34 = vld [vmem:[%s0 + $0x58] sm:$0xf]
  %v35 = vld [vmem:[%s0 + $0x5c] sm:$0xf]
  %v36 = vld [vmem:[%s0 + $0x60] sm:$0xf]
  %v37 = vld [vmem:[%s0 + $0x64] sm:$0xf]
  %v38 = vld [vmem:[%s0 + $0x68] sm:$0xf]
  %v39 = vld [vmem:[%s0 + $0x6c] sm:$0xf]
  %v40 = vld [vmem:[%s0 + $0x70] sm:$0xf]
  %v41 = vld [vmem:[%s0 + $0x74] sm:$0xf]
  %v42 = vld [vmem:[%s0 + $0x78] sm:$0xf]
  %v43 = vld [vmem:[%s0 + $0x7c] sm:$0xf]
  %v44 = vld [vmem:[%s0 + $0x80] sm:$0xf]
  %v45 = vld [vmem:[%s0 + $0x84] sm:$0xf]
  %v46 = vld [vmem:[%s0 + $0x88] sm:$0xf]
  %v47 = vld [vmem:[%s0 + $0x8c] sm:$0xf]
  %v48 = vld [vmem:[%s0 + $0x90] sm:$0xf]
  %v49 = vld [vmem:[%s0 + $0x94] sm:$0xf]
  %v50 = vld [vmem:[%s0 + $0x98] sm:$0xf]
  %v51 = vld [vmem:[%s0 + $0x9c] sm:$0xf]
  %v52 = vld [vmem:[%s0 + $0xa0] sm:$0xf]
  %v53 = vld [vmem:[%s0 + $0xa4] sm:$0xf]
  %v54 = vld [vmem:[%s0 + $0xa8] sm:$0xf]
  %v55 = vld [vmem:[%s0 + $0xac] sm:$0xf]
  %v56 = vld [vmem:[%s0 + $0xb0] sm:$0xf]
  %v57 = vld [vmem:[%s0 + $0xb4] sm:$0xf]
  %v58 = vld [vmem:[%s0 + $0xb8] sm:$0xf]
  %v59 = vld [vmem:[%s0 + $0xbc] sm:$0xf]
  %v60 = vld [vmem:[%s0 + $0xc0] sm:$0xf]
  %v61 = vld [vmem:[%s0 + $0xc4] sm:$0xf]
  %v62 = vld [vmem:[%s0 + $0xc8] sm:$0xf]
  %v63 = vld [vmem:[%s0 + $0xcc] sm:$0xf]
  %v64 = vld [vmem:[%s0 + $0xd0] sm:$0xf]
  %v65 = vld [vmem:[%s0 + $0xd4] sm:$0xf]
  %v66 = vld [vmem:[%s0 + $0xd8] sm:$0xf]
  %v67 = vld [vmem:[%s0 + $0xdc] sm:$0xf]
  %v68 = vld [vmem:[%s0 + $0xe0] sm:$0xf]
  %v69 = vld [vmem:[%s0 + $0xe4] sm:$0xf]
  %v70 = vld [vmem:[%s0 + $0xe8] sm:$0xf]
  %v71 = vld [vmem:[%s0 + $0xec] sm:$0xf]
  %v72 = vld [vmem:[%s0 + $0xf0] sm:$0xf]
  %v73 = vld [vmem:[%s0 + $0xf4] sm:$0xf]
  %v74 = vld [vmem:[%s0 + $0xf8] sm:$0xf]
  %v75 = vld [vmem:[%s0 + $0xfc] sm:$0xf]
  %v76 = vld [vmem:[%s1] sm:$0xff]
  %v77 = vld [vmem:[%s1 + $0x8] sm:$0xff]
  %v78 = vld [vmem:[%s1 + $0x10] sm:$0xff]
  %v79 = vld [vmem:[%s1 + $0x18] sm:$0xff]
  %v80 = vld [vmem:[%s1 + $0x20] sm:$0xff]
  %v81 = vld [vmem:[%s1 + $0x28] sm:$0xff]
  %v82 = vld [vmem:[%s1 + $0x30] sm:$0xff]
  %v83 = vld [vmem:[%s1 + $0x38] sm:$0xff]
  %v84 = vld [vmem:[%s1 + $0x40] sm:$0xff]
  %v85 = vld [vmem:[%s1 + $0x48] sm:$0xff]
  %v86 = vld [vmem:[%s1 + $0x50] sm:$0xff]
  %v87 = vld [vmem:[%s1 + $0x58] sm:$0xff]
  %v88 = vld [vmem:[%s1 + $0x60] sm:$0xff]
  %v89 = vld [vmem:[%s1 + $0x68] sm:$0xff]
  %v90 = vld [vmem:[%s1 + $0x70] sm:$0xff]
  %v91 = vld [vmem:[%s1 + $0x78] sm:$0xff]
  %v92 = vld [vmem:[%s1 + $0x80] sm:$0xff]
  %v93 = vld [vmem:[%s1 + $0x88] sm:$0xff]
  %v94 = vld [vmem:[%s1 + $0x90] sm:$0xff]
  %v95 = vld [vmem:[%s1 + $0x98] sm:$0xff]
  %v96 = vld [vmem:[%s1 + $0xa0] sm:$0xff]
  %v97 = vld [vmem:[%s1 + $0xa8] sm:$0xff]
  %v98 = vld [vmem:[%s1 + $0xb0] sm:$0xff]
  %v99 = vld [vmem:[%s1 + $0xb8] sm:$0xff]
  %v100 = vld [vmem:[%s1 + $0xc0] sm:$0xff]
  %v101 = vld [vmem:[%s1 + $0xc8] sm:$0xff]
  %v102 = vld [vmem:[%s1 + $0xd0] sm:$0xff]
  %v103 = vld [vmem:[%s1 + $0xd8] sm:$0xff]
  %v104 = vld [vmem:[%s1 + $0xe0] sm:$0xff]
  %v105 = vld [vmem:[%s1 + $0xe8] sm:$0xff]
  %v106 = vld [vmem:[%s1 + $0xf0] sm:$0xff]
  %v107 = vld [vmem:[%s1 + $0xf8] sm:$0xff]
  %v108 = vld [vmem:[%s1 + $0x100] sm:$0xff]
  %v109 = vld [vmem:[%s1 + $0x108] sm:$0xff]
  %v110 = vld [vmem:[%s1 + $0x110] sm:$0xff]
  %v111 = vld [vmem:[%s1 + $0x118] sm:$0xff]
  %v112 = vld [vmem:[%s1 + $0x120] sm:$0xff]
  %v113 = vld [vmem:[%s1 + $0x128] sm:$0xff]
  %v114 = vld [vmem:[%s1 + $0x130] sm:$0xff]
  %v115 = vld [vmem:[%s1 + $0x138] sm:$0xff]
  %v116 = vld [vmem:[%s1 + $0x140] sm:$0xff]
  %v117 = vld [vmem:[%s1 + $0x148] sm:$0xff]
  %v118 = vld [vmem:[%s1 + $0x150] sm:$0xff]
  %v119 = vld [vmem:[%s1 + $0x158] sm:$0xff]
  %v120 = vld [vmem:[%s1 + $0x160] sm:$0xff]
  %v121 = vld [vmem:[%s1 + $0x168] sm:$0xff]
  %v122 = vld [vmem:[%s1 + $0x170] sm:$0xff]
  %v123 = vld [vmem:[%s1 + $0x178] sm:$0xff]
  %v124 = vld [vmem:[%s1 + $0x180] sm:$0xff]
  %v125 = vpack.c.bf16 %v77, %v76
  %v126 = vpack.c.bf16 %v79, %v78
  %v127 = vpack.c.bf16 %v81, %v80
  %v128 = vpack.c.bf16 %v83, %v82
  %v129 = vpack.c.bf16 %v85, %v84
  %v130 = vpack.c.bf16 %v87, %v86
  %v131 = vpack.c.bf16 %v89, %v88
  %v132 = vpack.c.bf16 %v91, %v90
  %v133 = vlaneseq
  %v134 = vshrl.u32 %v133, 7
  %v135 = vsub.s32 0, %v134
  %v136 = vrot.slane %v92, %v135
  %v201 = vunpack.c.l.b16 %v12
  %v202 = vunpack.c.l.b16 %v13
  %v203 = vunpack.c.l.b16 %v14
  %v204 = vunpack.c.l.b16 %v15
  %v205 = vunpack.c.l.b16 %v16
  %v206 = vunpack.c.l.b16 %v17
  %v207 = vunpack.c.l.b16 %v18
  %v208 = vunpack.c.l.b16 %v19
  %v209 = vunpack.c.l.b16 %v20
  %v210 = vunpack.c.l.b16 %v21
  %v211 = vunpack.c.l.b16 %v22
  %v212 = vunpack.c.l.b16 %v23
  %v213 = vunpack.c.l.b16 %v24
  %v214 = vunpack.c.l.b16 %v25
  %v215 = vunpack.c.l.b16 %v26
  %v216 = vunpack.c.l.b16 %v27
  %v217 = vunpack.c.l.b16 %v28
  %v218 = vunpack.c.l.b16 %v29
  %v219 = vunpack.c.l.b16 %v30
  %v220 = vunpack.c.l.b16 %v31
  %v221 = vunpack.c.l.b16 %v32
  %v222 = vunpack.c.l.b16 %v33
  %v223 = vunpack.c.l.b16 %v34
  %v224 = vunpack.c.l.b16 %v35
  %v225 = vunpack.c.l.b16 %v36
  %v226 = vunpack.c.l.b16 %v37
  %v227 = vunpack.c.l.b16 %v38
  %v228 = vunpack.c.l.b16 %v39
  %v229 = vunpack.c.l.b16 %v40
  %v230 = vunpack.c.l.b16 %v41
  %v231 = vunpack.c.l.b16 %v42
  %v232 = vunpack.c.l.b16 %v43
  %v233 = vunpack.c.l.b16 %v44
  %v234 = vunpack.c.l.b16 %v45
  %v235 = vunpack.c.l.b16 %v46
  %v236 = vunpack.c.l.b16 %v47
  %v237 = vunpack.c.l.b16 %v48
  %v238 = vunpack.c.l.b16 %v49
  %v239 = vunpack.c.l.b16 %v50
  %v240 = vunpack.c.l.b16 %v51
  %v241 = vunpack.c.l.b16 %v52
  %v242 = vunpack.c.l.b16 %v53
  %v243 = vunpack.c.l.b16 %v54
  %v244 = vunpack.c.l.b16 %v55
  %v245 = vunpack.c.l.b16 %v56
  %v246 = vunpack.c.l.b16 %v57
  %v247 = vunpack.c.l.b16 %v58
  %v248 = vunpack.c.l.b16 %v59
  %v249 = vunpack.c.l.b16 %v60
  %v250 = vunpack.c.l.b16 %v61
  %v251 = vunpack.c.l.b16 %v62
  %v252 = vunpack.c.l.b16 %v63
  %v253 = vunpack.c.l.b16 %v64
  %v254 = vunpack.c.l.b16 %v65
  %v255 = vunpack.c.l.b16 %v66
  %v256 = vunpack.c.l.b16 %v67
  %v257 = vunpack.c.l.b16 %v68
  %v258 = vunpack.c.l.b16 %v69
  %v259 = vunpack.c.l.b16 %v70
  %v260 = vunpack.c.l.b16 %v71
  %v261 = vunpack.c.l.b16 %v72
  %v262 = vunpack.c.l.b16 %v73
  %v263 = vunpack.c.l.b16 %v74
  %v264 = vunpack.c.l.b16 %v75
  %v265 = vpack.c.b16 %v202, %v201
  %v266 = vpack.c.b16 %v204, %v203
  %v267 = vpack.c.b16 %v206, %v205
  %v268 = vpack.c.b16 %v208, %v207
  %v269 = vpack.c.b16 %v210, %v209
  %v270 = vpack.c.b16 %v212, %v211
  %v271 = vpack.c.b16 %v214, %v213
  %v272 = vpack.c.b16 %v216, %v215
  %v273 = vpack.c.b16 %v218, %v217
  %v274 = vpack.c.b16 %v220, %v219
  %v275 = vpack.c.b16 %v222, %v221
  %v276 = vpack.c.b16 %v224, %v223
  %v277 = vpack.c.b16 %v226, %v225
  %v278 = vpack.c.b16 %v228, %v227
  %v279 = vpack.c.b16 %v230, %v229
  %v280 = vpack.c.b16 %v232, %v231
  %v281 = vpack.c.b16 %v234, %v233
  %v282 = vpack.c.b16 %v236, %v235
  %v283 = vpack.c.b16 %v238, %v237
  %v284 = vpack.c.b16 %v240, %v239
  %v285 = vpack.c.b16 %v242, %v241
  %v286 = vpack.c.b16 %v244, %v243
  %v287 = vpack.c.b16 %v246, %v245
  %v288 = vpack.c.b16 %v248, %v247
  %v289 = vpack.c.b16 %v250, %v249
  %v290 = vpack.c.b16 %v252, %v251
  %v291 = vpack.c.b16 %v254, %v253
  %v292 = vpack.c.b16 %v256, %v255
  %v293 = vpack.c.b16 %v258, %v257
  %v294 = vpack.c.b16 %v260, %v259
  %v295 = vpack.c.b16 %v262, %v261
  %v296 = vpack.c.b16 %v264, %v263
  %329 = vmatprep.subr.bf16.mxu0 0
  %330 = vmatpush1.bf16.msra.mxu0 %v125
  %331 = vmatprep.subr.bf16.mxu0 0
  %332 = vmatpush1.bf16.msra.mxu0 %v126
  %333 = vmatprep.subr.bf16.mxu0 0
  %334 = vmatpush1.bf16.msra.mxu0 %v127
  %335 = vmatprep.subr.bf16.mxu0 0
  %336 = vmatpush1.bf16.msra.mxu0 %v128
  %337 = vmatprep.subr.bf16.mxu0 0
  %338 = vmatpush1.bf16.msra.mxu0 %v129
  %339 = vmatprep.subr.bf16.mxu0 0
  %340 = vmatpush1.bf16.msra.mxu0 %v130
  %341 = vmatprep.subr.bf16.mxu0 0
  %342 = vmatpush1.bf16.msra.mxu0 %v131
  %343 = vmatprep.subr.bf16.mxu0 0
  %344 = vmatpush1.bf16.msra.mxu0 %v132
  %345 = vmatprep.subr.bf16.mxu0 0
  %346 = vmatpush1.bf16.msra.mxu0 0
  %347 = vmatprep.subr.bf16.mxu0 0
  %348 = vmatpush1.bf16.msra.mxu0 0
  %349 = vmatprep.subr.bf16.mxu0 0
  %350 = vmatpush1.bf16.msra.mxu0 0
  %351 = vmatprep.subr.bf16.mxu0 0
  %352 = vmatpush1.bf16.msra.mxu0 0
  %353 = vmatprep.subr.bf16.mxu0 0
  %354 = vmatpush1.bf16.msra.mxu0 0
  %355 = vmatprep.subr.bf16.mxu0 0
  %356 = vmatpush1.bf16.msra.mxu0 0
  %357 = vmatprep.subr.bf16.mxu0 0
  %358 = vmatpush1.bf16.msra.mxu0 0
  %359 = vmatprep.subr.bf16.mxu0 0
  %360 = vmatpush1.bf16.msra.mxu0 0
  %361 = vmatprep.mubr.bf16.mxu0 0
  %362 = vmatmul.mubr.bf16.gmra.mrb[0].mxu0 %v265
  %v363 = vpop.f32.mrb[0].mxu0
  %v364 = vadd.f32 %v136, %v363
  %v365 = vpop.f32.mrb[0].mxu0
  %v366 = vpop.f32.mrb[0].mxu0
  %v367 = vadd.f32 %v136, %v366
  %v368 = vpop.f32.mrb[0].mxu0
  %369 = vmatprep.mubr.bf16.mxu0 0
  %370 = vmatmul.mubr.bf16.gmra.mrb[0].mxu0 %v266
  %v371 = vpop.f32.mrb[0].mxu0
  %v372 = vadd.f32 %v136, %v371
  %v373 = vpop.f32.mrb[0].mxu0
  %v374 = vpop.f32.mrb[0].mxu0
  %v375 = vadd.f32 %v136, %v374
  %v376 = vpop.f32.mrb[0].mxu0
  %377 = vmatprep.mubr.bf16.mxu0 0
  %378 = vmatmul.mubr.bf16.gmra.mrb[0].mxu0 %v267
  %v379 = vpop.f32.mrb[0].mxu0
  %v380 = vadd.f32 %v136, %v379
  %v381 = vpop.f32.mrb[0].mxu0
  %v382 = vpop.f32.mrb[0].mxu0
  %v383 = vadd.f32 %v136, %v382
  %v384 = vpop.f32.mrb[0].mxu0
  %385 = vmatprep.mubr.bf16.mxu0 0
  %386 = vmatmul.mubr.bf16.gmra.mrb[0].mxu0 %v268
  %v387 = vpop.f32.mrb[0].mxu0
  %v388 = vadd.f32 %v136, %v387
  %v389 = vpop.f32.mrb[0].mxu0
  %v390 = vpop.f32.mrb[0].mxu0
  %v391 = vadd.f32 %v136, %v390
  %v392 = vpop.f32.mrb[0].mxu0
  %393 = vmatprep.mubr.bf16.mxu0 0
  %394 = vmatmul.mubr.bf16.gmra.mrb[0].mxu0 %v269
  %v395 = vpop.f32.mrb[0].mxu0
  %v396 = vadd.f32 %v136, %v395
  %v397 = vpop.f32.mrb[0].mxu0
  %v398 = vpop.f32.mrb[0].mxu0
  %v399 = vadd.f32 %v136, %v398
  %v400 = vpop.f32.mrb[0].mxu0
  %401 = vmatprep.mubr.bf16.mxu0 0
  %402 = vmatmul.mubr.bf16.gmra.mrb[0].mxu0 %v270
  %v403 = vpop.f32.mrb[0].mxu0
  %v404 = vadd.f32 %v136, %v403
  %v405 = vpop.f32.mrb[0].mxu0
  %v406 = vpop.f32.mrb[0].mxu0
  %v407 = vadd.f32 %v136, %v406
  %v408 = vpop.f32.mrb[0].mxu0
  %409 = vmatprep.mubr.bf16.mxu0 0
  %410 = vmatmul.mubr.bf16.gmra.mrb[0].mxu0 %v271
  %v411 = vpop.f32.mrb[0].mxu0
  %v412 = vadd.f32 %v136, %v411
  %v413 = vpop.f32.mrb[0].mxu0
  %v414 = vpop.f32.mrb[0].mxu0
  %v415 = vadd.f32 %v136, %v414
  %v416 = vpop.f32.mrb[0].mxu0
  %417 = vmatprep.mubr.bf16.mxu0 0
  %418 = vmatmul.mubr.bf16.gmra.mrb[0].mxu0 %v272
  %v419 = vpop.f32.mrb[0].mxu0
  %v420 = vadd.f32 %v136, %v419
  %v421 = vpop.f32.mrb[0].mxu0
  %v422 = vpop.f32.mrb[0].mxu0
  %v423 = vadd.f32 %v136, %v422
  %v424 = vpop.f32.mrb[0].mxu0
  %425 = vmatprep.mubr.bf16.mxu0 0
  %426 = vmatmul.mubr.bf16.gmra.mrb[0].mxu0 %v273
  %v427 = vpop.f32.mrb[0].mxu0
  %v428 = vadd.f32 %v136, %v427
  %v429 = vpop.f32.mrb[0].mxu0
  %v430 = vpop.f32.mrb[0].mxu0
  %v431 = vadd.f32 %v136, %v430
  %v432 = vpop.f32.mrb[0].mxu0
  %433 = vmatprep.mubr.bf16.mxu0 0
  %434 = vmatmul.mubr.bf16.gmra.mrb[0].mxu0 %v274
  %v435 = vpop.f32.mrb[0].mxu0
  %v436 = vadd.f32 %v136, %v435
  %v437 = vpop.f32.mrb[0].mxu0
  %v438 = vpop.f32.mrb[0].mxu0
  %v439 = vadd.f32 %v136, %v438
  %v440 = vpop.f32.mrb[0].mxu0
  %441 = vmatprep.mubr.bf16.mxu0 0
  %442 = vmatmul.mubr.bf16.gmra.mrb[0].mxu0 %v275
  %v443 = vpop.f32.mrb[0].mxu0
  %v444 = vadd.f32 %v136, %v443
  %v445 = vpop.f32.mrb[0].mxu0
  %v446 = vpop.f32.mrb[0].mxu0
  %v447 = vadd.f32 %v136, %v446
  %v448 = vpop.f32.mrb[0].mxu0
  %449 = vmatprep.mubr.bf16.mxu0 0
  %450 = vmatmul.mubr.bf16.gmra.mrb[0].mxu0 %v276
  %v451 = vpop.f32.mrb[0].mxu0
  %v452 = vadd.f32 %v136, %v451
  %v453 = vpop.f32.mrb[0].mxu0
  %v454 = vpop.f32.mrb[0].mxu0
  %v455 = vadd.f32 %v136, %v454
  %v456 = vpop.f32.mrb[0].mxu0
  %457 = vmatprep.mubr.bf16.mxu0 0
  %458 = vmatmul.mubr.bf16.gmra.mrb[0].mxu0 %v277
  %v459 = vpop.f32.mrb[0].mxu0
  %v460 = vadd.f32 %v136, %v459
  %v461 = vpop.f32.mrb[0].mxu0
  %v462 = vpop.f32.mrb[0].mxu0
  %v463 = vadd.f32 %v136, %v462
  %v464 = vpop.f32.mrb[0].mxu0
  %465 = vmatprep.mubr.bf16.mxu0 0
  %466 = vmatmul.mubr.bf16.gmra.mrb[0].mxu0 %v278
  %v467 = vpop.f32.mrb[0].mxu0
  %v468 = vadd.f32 %v136, %v467
  %v469 = vpop.f32.mrb[0].mxu0
  %v470 = vpop.f32.mrb[0].mxu0
  %v471 = vadd.f32 %v136, %v470
  %v472 = vpop.f32.mrb[0].mxu0
  %473 = vmatprep.mubr.bf16.mxu0 0
  %474 = vmatmul.mubr.bf16.gmra.mrb[0].mxu0 %v279
  %v475 = vpop.f32.mrb[0].mxu0
  %v476 = vadd.f32 %v136, %v475
  %v477 = vpop.f32.mrb[0].mxu0
  %v478 = vpop.f32.mrb[0].mxu0
  %v479 = vadd.f32 %v136, %v478
  %v480 = vpop.f32.mrb[0].mxu0
  %481 = vmatprep.mubr.bf16.mxu0 0
  %482 = vmatmul.mubr.bf16.gmra.mrb[0].mxu0 %v280
  %v483 = vpop.f32.mrb[0].mxu0
  %v484 = vadd.f32 %v136, %v483
  %v485 = vpop.f32.mrb[0].mxu0
  %v486 = vpop.f32.mrb[0].mxu0
  %v487 = vadd.f32 %v136, %v486
  %v488 = vpop.f32.mrb[0].mxu0
  %489 = vmatprep.mubr.bf16.mxu0 0
  %490 = vmatmul.mubr.bf16.gmra.mrb[0].mxu0 %v281
  %v491 = vpop.f32.mrb[0].mxu0
  %v492 = vadd.f32 %v136, %v491
  %v493 = vpop.f32.mrb[0].mxu0
  %v494 = vpop.f32.mrb[0].mxu0
  %v495 = vadd.f32 %v136, %v494
  %v496 = vpop.f32.mrb[0].mxu0
  %497 = vmatprep.mubr.bf16.mxu0 0
  %498 = vmatmul.mubr.bf16.gmra.mrb[0].mxu0 %v282
  %v499 = vpop.f32.mrb[0].mxu0
  %v500 = vadd.f32 %v136, %v499
  %v501 = vpop.f32.mrb[0].mxu0
  %v502 = vpop.f32.mrb[0].mxu0
  %v503 = vadd.f32 %v136, %v502
  %v504 = vpop.f32.mrb[0].mxu0
  %505 = vmatprep.mubr.bf16.mxu0 0
  %506 = vmatmul.mubr.bf16.gmra.mrb[0].mxu0 %v283
  %v507 = vpop.f32.mrb[0].mxu0
  %v508 = vadd.f32 %v136, %v507
  %v509 = vpop.f32.mrb[0].mxu0
  %v510 = vpop.f32.mrb[0].mxu0
  %v511 = vadd.f32 %v136, %v510
  %v512 = vpop.f32.mrb[0].mxu0
  %513 = vmatprep.mubr.bf16.mxu0 0
  %514 = vmatmul.mubr.bf16.gmra.mrb[0].mxu0 %v284
  %v515 = vpop.f32.mrb[0].mxu0
  %v516 = vadd.f32 %v136, %v515
  %v517 = vpop.f32.mrb[0].mxu0
  %v518 = vpop.f32.mrb[0].mxu0
  %v519 = vadd.f32 %v136, %v518
  %v520 = vpop.f32.mrb[0].mxu0
  %521 = vmatprep.mubr.bf16.mxu0 0
  %522 = vmatmul.mubr.bf16.gmra.mrb[0].mxu0 %v285
  %v523 = vpop.f32.mrb[0].mxu0
  %v524 = vadd.f32 %v136, %v523
  %v525 = vpop.f32.mrb[0].mxu0
  %v526 = vpop.f32.mrb[0].mxu0
  %v527 = vadd.f32 %v136, %v526
  %v528 = vpop.f32.mrb[0].mxu0
  %529 = vmatprep.mubr.bf16.mxu0 0
  %530 = vmatmul.mubr.bf16.gmra.mrb[0].mxu0 %v286
  %v531 = vpop.f32.mrb[0].mxu0
  %v532 = vadd.f32 %v136, %v531
  %v533 = vpop.f32.mrb[0].mxu0
  %v534 = vpop.f32.mrb[0].mxu0
  %v535 = vadd.f32 %v136, %v534
  %v536 = vpop.f32.mrb[0].mxu0
  %537 = vmatprep.mubr.bf16.mxu0 0
  %538 = vmatmul.mubr.bf16.gmra.mrb[0].mxu0 %v287
  %v539 = vpop.f32.mrb[0].mxu0
  %v540 = vadd.f32 %v136, %v539
  %v541 = vpop.f32.mrb[0].mxu0
  %v542 = vpop.f32.mrb[0].mxu0
  %v543 = vadd.f32 %v136, %v542
  %v544 = vpop.f32.mrb[0].mxu0
  %545 = vmatprep.mubr.bf16.mxu0 0
  %546 = vmatmul.mubr.bf16.gmra.mrb[0].mxu0 %v288
  %v547 = vpop.f32.mrb[0].mxu0
  %v548 = vadd.f32 %v136, %v547
  %v549 = vpop.f32.mrb[0].mxu0
  %v550 = vpop.f32.mrb[0].mxu0
  %v551 = vadd.f32 %v136, %v550
  %v552 = vpop.f32.mrb[0].mxu0
  %553 = vmatprep.mubr.bf16.mxu0 0
  %554 = vmatmul.mubr.bf16.gmra.mrb[0].mxu0 %v289
  %v555 = vpop.f32.mrb[0].mxu0
  %v556 = vadd.f32 %v136, %v555
  %v557 = vpop.f32.mrb[0].mxu0
  %v558 = vpop.f32.mrb[0].mxu0
  %v559 = vadd.f32 %v136, %v558
  %v560 = vpop.f32.mrb[0].mxu0
  %561 = vmatprep.mubr.bf16.mxu0 0
  %562 = vmatmul.mubr.bf16.gmra.mrb[0].mxu0 %v290
  %v563 = vpop.f32.mrb[0].mxu0
  %v564 = vadd.f32 %v136, %v563
  %v565 = vpop.f32.mrb[0].mxu0
  %v566 = vpop.f32.mrb[0].mxu0
  %v567 = vadd.f32 %v136, %v566
  %v568 = vpop.f32.mrb[0].mxu0
  %569 = vmatprep.mubr.bf16.mxu0 0
  %570 = vmatmul.mubr.bf16.gmra.mrb[0].mxu0 %v291
  %v571 = vpop.f32.mrb[0].mxu0
  %v572 = vadd.f32 %v136, %v571
  %v573 = vpop.f32.mrb[0].mxu0
  %v574 = vpop.f32.mrb[0].mxu0
  %v575 = vadd.f32 %v136, %v574
  %v576 = vpop.f32.mrb[0].mxu0
  %577 = vmatprep.mubr.bf16.mxu0 0
  %578 = vmatmul.mubr.bf16.gmra.mrb[0].mxu0 %v292
  %v579 = vpop.f32.mrb[0].mxu0
  %v580 = vadd.f32 %v136, %v579
  %v581 = vpop.f32.mrb[0].mxu0
  %v582 = vpop.f32.mrb[0].mxu0
  %v583 = vadd.f32 %v136, %v582
  %v584 = vpop.f32.mrb[0].mxu0
  %585 = vmatprep.mubr.bf16.mxu0 0
  %586 = vmatmul.mubr.bf16.gmra.mrb[0].mxu0 %v293
  %v587 = vpop.f32.mrb[0].mxu0
  %v588 = vadd.f32 %v136, %v587
  %v589 = vpop.f32.mrb[0].mxu0
  %v590 = vpop.f32.mrb[0].mxu0
  %v591 = vadd.f32 %v136, %v590
  %v592 = vpop.f32.mrb[0].mxu0
  %593 = vmatprep.mubr.bf16.mxu0 0
  %594 = vmatmul.mubr.bf16.gmra.mrb[0].mxu0 %v294
  %v595 = vpop.f32.mrb[0].mxu0
  %v596 = vadd.f32 %v136, %v595
  %v597 = vpop.f32.mrb[0].mxu0
  %v598 = vpop.f32.mrb[0].mxu0
  %v599 = vadd.f32 %v136, %v598
  %v600 = vpop.f32.mrb[0].mxu0
  %601 = vmatprep.mubr.bf16.mxu0 0
  %602 = vmatmul.mubr.bf16.gmra.mrb[0].mxu0 %v295
  %v603 = vpop.f32.mrb[0].mxu0
  %v604 = vadd.f32 %v136, %v603
  %v605 = vpop.f32.mrb[0].mxu0
  %v606 = vpop.f32.mrb[0].mxu0
  %v607 = vadd.f32 %v136, %v606
  %v608 = vpop.f32.mrb[0].mxu0
  %609 = vmatprep.mubr.bf16.mxu0 0
  %610 = vmatmul.mubr.bf16.gmra.mrb[0].mxu0 %v296
  %v611 = vpop.f32.mrb[0].mxu0
  %v612 = vadd.f32 %v136, %v611
  %v613 = vpop.f32.mrb[0].mxu0
  %v614 = vpop.f32.mrb[0].mxu0
  %v615 = vadd.f32 %v136, %v614
  %v616 = vpop.f32.mrb[0].mxu0
  %617 = vdwg.mxu0
  %v618 = vmax.f32 %v364, 0.0
  %v619 = vmax.f32 %v367, 0.0
  %v620 = vmax.f32 %v372, 0.0
  %v621 = vmax.f32 %v375, 0.0
  %v622 = vmax.f32 %v380, 0.0
  %v623 = vmax.f32 %v383, 0.0
  %v624 = vmax.f32 %v388, 0.0
  %v625 = vmax.f32 %v391, 0.0
  %v626 = vmax.f32 %v396, 0.0
  %v627 = vmax.f32 %v399, 0.0
  %v628 = vmax.f32 %v404, 0.0
  %v629 = vmax.f32 %v407, 0.0
  %v630 = vmax.f32 %v412, 0.0
  %v631 = vmax.f32 %v415, 0.0
  %v632 = vmax.f32 %v420, 0.0
  %v633 = vmax.f32 %v423, 0.0
  %v634 = vmax.f32 %v428, 0.0
  %v635 = vmax.f32 %v431, 0.0
  %v636 = vmax.f32 %v436, 0.0
  %v637 = vmax.f32 %v439, 0.0
  %v638 = vmax.f32 %v444, 0.0
  %v639 = vmax.f32 %v447, 0.0
  %v640 = vmax.f32 %v452, 0.0
  %v641 = vmax.f32 %v455, 0.0
  %v642 = vmax.f32 %v460, 0.0
  %v643 = vmax.f32 %v463, 0.0
  %v644 = vmax.f32 %v468, 0.0
  %v645 = vmax.f32 %v471, 0.0
  %v646 = vmax.f32 %v476, 0.0
  %v647 = vmax.f32 %v479, 0.0
  %v648 = vmax.f32 %v484, 0.0
  %v649 = vmax.f32 %v487, 0.0
  %v650 = vmax.f32 %v492, 0.0
  %v651 = vmax.f32 %v495, 0.0
  %v652 = vmax.f32 %v500, 0.0
  %v653 = vmax.f32 %v503, 0.0
  %v654 = vmax.f32 %v508, 0.0
  %v655 = vmax.f32 %v511, 0.0
  %v656 = vmax.f32 %v516, 0.0
  %v657 = vmax.f32 %v519, 0.0
  %v658 = vmax.f32 %v524, 0.0
  %v659 = vmax.f32 %v527, 0.0
  %v660 = vmax.f32 %v532, 0.0
  %v661 = vmax.f32 %v535, 0.0
  %v662 = vmax.f32 %v540, 0.0
  %v663 = vmax.f32 %v543, 0.0
  %v664 = vmax.f32 %v548, 0.0
  %v665 = vmax.f32 %v551, 0.0
  %v666 = vmax.f32 %v556, 0.0
  %v667 = vmax.f32 %v559, 0.0
  %v668 = vmax.f32 %v564, 0.0
  %v669 = vmax.f32 %v567, 0.0
  %v670 = vmax.f32 %v572, 0.0
  %v671 = vmax.f32 %v575, 0.0
  %v672 = vmax.f32 %v580, 0.0
  %v673 = vmax.f32 %v583, 0.0
  %v674 = vmax.f32 %v588, 0.0
  %v675 = vmax.f32 %v591, 0.0
  %v676 = vmax.f32 %v596, 0.0
  %v677 = vmax.f32 %v599, 0.0
  %v678 = vmax.f32 %v604, 0.0
  %v679 = vmax.f32 %v607, 0.0
  %v680 = vmax.f32 %v612, 0.0
  %v681 = vmax.f32 %v615, 0.0
  %v682 = vadd.f32 %v618, %v619
  %v683 = vadd.f32 %v682, %v620
  %v684 = vadd.f32 %v683, %v621
  %v685 = vadd.f32 %v684, %v622
  %v686 = vadd.f32 %v685, %v623
  %v687 = vadd.f32 %v686, %v624
  %v688 = vadd.f32 %v687, %v625
  %v689 = vadd.f32 %v688, %v626
  %v690 = vadd.f32 %v689, %v627
  %v691 = vadd.f32 %v690, %v628
  %v692 = vadd.f32 %v691, %v629
  %v693 = vadd.f32 %v692, %v630
  %v694 = vadd.f32 %v693, %v631
  %v695 = vadd.f32 %v694, %v632
  %v696 = vadd.f32 %v695, %v633
  %v697 = vadd.f32 %v696, %v634
  %v698 = vadd.f32 %v697, %v635
  %v699 = vadd.f32 %v698, %v636
  %v700 = vadd.f32 %v699, %v637
  %v701 = vadd.f32 %v700, %v638
  %v702 = vadd.f32 %v701, %v639
  %v703 = vadd.f32 %v702, %v640
  %v704 = vadd.f32 %v703, %v641
  %v705 = vadd.f32 %v704, %v642
  %v706 = vadd.f32 %v705, %v643
  %v707 = vadd.f32 %v706, %v644
  %v708 = vadd.f32 %v707, %v645
  %v709 = vadd.f32 %v708, %v646
  %v710 = vadd.f32 %v709, %v647
  %v711 = vadd.f32 %v710, %v648
  %v712 = vadd.f32 %v711, %v649
  %v713 = vrot.slane %v712, 4
  %v714 = vadd.f32 %v712, %v713
  %v715 = vrot.slane %v714, 2
  %v716 = vadd.f32 %v714, %v715
  %v717 = vrot.slane %v716, 1
  %v718 = vadd.f32 %v716, %v717
  %v719 = vadd.f32 %v650, %v651
  %v720 = vadd.f32 %v719, %v652
  %v721 = vadd.f32 %v720, %v653
  %v722 = vadd.f32 %v721, %v654
  %v723 = vadd.f32 %v722, %v655
  %v724 = vadd.f32 %v723, %v656
  %v725 = vadd.f32 %v724, %v657
  %v726 = vadd.f32 %v725, %v658
  %v727 = vadd.f32 %v726, %v659
  %v728 = vadd.f32 %v727, %v660
  %v729 = vadd.f32 %v728, %v661
  %v730 = vadd.f32 %v729, %v662
  %v731 = vadd.f32 %v730, %v663
  %v732 = vadd.f32 %v731, %v664
  %v733 = vadd.f32 %v732, %v665
  %v734 = vadd.f32 %v733, %v666
  %v735 = vadd.f32 %v734, %v667
  %v736 = vadd.f32 %v735, %v668
  %v737 = vadd.f32 %v736, %v669
  %v738 = vadd.f32 %v737, %v670
  %v739 = vadd.f32 %v738, %v671
  %v740 = vadd.f32 %v739, %v672
  %v741 = vadd.f32 %v740, %v673
  %v742 = vadd.f32 %v741, %v674
  %v743 = vadd.f32 %v742, %v675
  %v744 = vadd.f32 %v743, %v676
  %v745 = vadd.f32 %v744, %v677
  %v746 = vadd.f32 %v745, %v678
  %v747 = vadd.f32 %v746, %v679
  %v748 = vadd.f32 %v747, %v680
  %v749 = vadd.f32 %v748, %v681
  %v750 = vrot.slane %v749, 4
  %v751 = vadd.f32 %v749, %v750
  %v752 = vrot.slane %v751, 2
  %v753 = vadd.f32 %v751, %v752
  %v754 = vrot.slane %v753, 1
  %v755 = vadd.f32 %v753, %v754
  %v756 = vpack.c.bf16 %v718, %v718
  %v757 = vpack.c.bf16 %v755, %v755
  %v758 = vpack.c.bf16 %v94, %v93
  %v759 = vpack.c.bf16 %v96, %v95
  %v760 = vpack.c.bf16 %v98, %v97
  %v761 = vpack.c.bf16 %v100, %v99
  %v762 = vpack.c.bf16 %v102, %v101
  %v763 = vpack.c.bf16 %v104, %v103
  %v764 = vpack.c.bf16 %v106, %v105
  %v765 = vpack.c.bf16 %v108, %v107
  %v766 = vlaneseq
  %v767 = vshrl.u32 %v766, 7
  %v768 = vsub.s32 1, %v767
  %v769 = vrot.slane %v92, %v768
  %v772 = vunpack.c.l.b16 %v756
  %v773 = vunpack.c.l.b16 %v757
  %vm774 = vcmask 1041409
  %v775 = vsel %vm774, %v773, %v772
  %v776 = vpack.c.b16 %v775, %v775
  %778 = vmatprep.subr.bf16.mxu0 0
  %779 = vmatpush1.bf16.msra.mxu0 %v758
  %780 = vmatprep.subr.bf16.mxu0 0
  %781 = vmatpush1.bf16.msra.mxu0 %v759
  %782 = vmatprep.subr.bf16.mxu0 0
  %783 = vmatpush1.bf16.msra.mxu0 %v760
  %784 = vmatprep.subr.bf16.mxu0 0
  %785 = vmatpush1.bf16.msra.mxu0 %v761
  %786 = vmatprep.subr.bf16.mxu0 0
  %787 = vmatpush1.bf16.msra.mxu0 %v762
  %788 = vmatprep.subr.bf16.mxu0 0
  %789 = vmatpush1.bf16.msra.mxu0 %v763
  %790 = vmatprep.subr.bf16.mxu0 0
  %791 = vmatpush1.bf16.msra.mxu0 %v764
  %792 = vmatprep.subr.bf16.mxu0 0
  %793 = vmatpush1.bf16.msra.mxu0 %v765
  %794 = vmatprep.subr.bf16.mxu0 0
  %795 = vmatpush1.bf16.msra.mxu0 0
  %796 = vmatprep.subr.bf16.mxu0 0
  %797 = vmatpush1.bf16.msra.mxu0 0
  %798 = vmatprep.subr.bf16.mxu0 0
  %799 = vmatpush1.bf16.msra.mxu0 0
  %800 = vmatprep.subr.bf16.mxu0 0
  %801 = vmatpush1.bf16.msra.mxu0 0
  %802 = vmatprep.subr.bf16.mxu0 0
  %803 = vmatpush1.bf16.msra.mxu0 0
  %804 = vmatprep.subr.bf16.mxu0 0
  %805 = vmatpush1.bf16.msra.mxu0 0
  %806 = vmatprep.subr.bf16.mxu0 0
  %807 = vmatpush1.bf16.msra.mxu0 0
  %808 = vmatprep.subr.bf16.mxu0 0
  %809 = vmatpush1.bf16.msra.mxu0 0
  %810 = vmatprep.mubr.bf16.mxu0 0
  %811 = vmatmul.mubr.bf16.gmra.mrb[0].mxu0 %v776
  %v812 = vpop.f32.mrb[0].mxu0
  %v813 = vadd.f32 %v769, %v812
  %v814 = vpop.f32.mrb[0].mxu0
  %v815 = vpop.f32.mrb[0].mxu0
  %v816 = vpop.f32.mrb[0].mxu0
  %817 = vdwg.mxu0
  %v818 = vmax.f32 %v813, 0.0
  %v819 = vpack.c.bf16 %v818, %v818
  %v820 = vpack.c.bf16 %v110, %v109
  %v821 = vpack.c.bf16 %v112, %v111
  %v822 = vpack.c.bf16 %v114, %v113
  %v823 = vpack.c.bf16 %v116, %v115
  %v824 = vpack.c.bf16 %v118, %v117
  %v825 = vpack.c.bf16 %v120, %v119
  %v826 = vpack.c.bf16 %v122, %v121
  %v827 = vpack.c.bf16 %v124, %v123
  %v828 = vlaneseq
  %v829 = vshrl.u32 %v828, 7
  %v830 = vsub.s32 2, %v829
  %v831 = vrot.slane %v92, %v830
  %832 = vmatprep.subr.bf16.mxu0 0
  %833 = vmatpush1.bf16.msra.mxu0 %v820
  %834 = vmatprep.subr.bf16.mxu0 0
  %835 = vmatpush1.bf16.msra.mxu0 %v821
  %836 = vmatprep.subr.bf16.mxu0 0
  %837 = vmatpush1.bf16.msra.mxu0 %v822
  %838 = vmatprep.subr.bf16.mxu0 0
  %839 = vmatpush1.bf16.msra.mxu0 %v823
  %840 = vmatprep.subr.bf16.mxu0 0
  %841 = vmatpush1.bf16.msra.mxu0 %v824
  %842 = vmatprep.subr.bf16.mxu0 0
  %843 = vmatpush1.bf16.msra.mxu0 %v825
  %844 = vmatprep.subr.bf16.mxu0 0
  %845 = vmatpush1.bf16.msra.mxu0 %v826
  %846 = vmatprep.subr.bf16.mxu0 0
  %847 = vmatpush1.bf16.msra.mxu0 %v827
  %848 = vmatprep.subr.bf16.mxu0 0
  %849 = vmatpush1.bf16.msra.mxu0 0
  %850 = vmatprep.subr.bf16.mxu0 0
  %851 = vmatpush1.bf16.msra.mxu0 0
  %852 = vmatprep.subr.bf16.mxu0 0
  %853 = vmatpush1.bf16.msra.mxu0 0
  %854 = vmatprep.subr.bf16.mxu0 0
  %855 = vmatpush1.bf16.msra.mxu0 0
  %856 = vmatprep.subr.bf16.mxu0 0
  %857 = vmatpush1.bf16.msra.mxu0 0
  %858 = vmatprep.subr.bf16.mxu0 0
  %859 = vmatpush1.bf16.msra.mxu0 0
  %860 = vmatprep.subr.bf16.mxu0 0
  %861 = vmatpush1.bf16.msra.mxu0 0
  %862 = vmatprep.subr.bf16.mxu0 0
  %863 = vmatpush1.bf16.msra.mxu0 0
  %864 = vmatprep.mubr.bf16.mxu0 0
  %865 = vmatmul.mubr.bf16.gmra.mrb[0].mxu0 %v819
  %v866 = vpop.f32.mrb[0].mxu0
  %v867 = vadd.f32 %v831, %v866
  %v868 = vpop.f32.mrb[0].mxu0
  %v869 = vpop.f32.mrb[0].mxu0
  %v870 = vpop.f32.mrb[0].mxu0
  %871 = vdwg.mxu0
  %v872 = vlaneseq
  %v873 = vshrl.u32 %v872, 7
  %v874 = vsub.s32 3, %v873
  %v875 = vrot.slane %v92, %v874
  %v876 = vsub.f32 %v818, %v875
  %v877 = vmul.f32 %v876, %v876
  %vm878 = vcmask 1041408
  %v879 = vsel %vm878, %v877, 0.0
  %880 = vadd.xlane.f32.xlu0 %v879
  %v881 = vpop.xlane.xlu0 %880
  %v882 = vlaneseq
  %v883 = vshrl.u32 %v882, 7
  %v884 = vsub.s32 4, %v883
  %v885 = vrot.slane %v92, %v884
  %vm886 = vcmp.gt.f32.partialorder %v881, %v885
  %v887 = vsel %vm886, 1, 0
  %v888 = vlaneseq
  %v889 = vand.u32 %v888, 127
  %vm890 = vcmp.lt.s32.totalorder %v889, 5
  %v891 = vsel %vm890, %v867, -inf
  %v892 = vsel %vm878, %v891, -inf
  %893 = vmax.xlane.f32.xlu0 %v892
  %v894 = vpop.xlane.xlu0 %893
  %vm895 = vcmp.eq.f32.partialorder %v891, %v894
  %v896 = vsel %vm895, %v889, 128
  %v897 = vsel %vm878, %v896, 2147483647
  %v898 = vand.u32 %v897, 65535
  %v899 = vshra.s32 %v897, 16
  %v900 = vcvt.s32.f32 %v898
  %v901 = vcvt.s32.f32 %v899
  %902 = vmin.xlane.f32.xlu0 %v901
  %v903 = vpop.xlane.xlu0 %902
  %vm904 = vcmp.eq.f32.partialorder %v901, %v903
  %v905 = vsel %vm904, %v900, inf
  %906 = vmin.xlane.f32.xlu0 %v905
  %v907 = vpop.xlane.xlu0 %906
  %v908 = vcvt.f32.s32 %v907
  %v909 = vcvt.f32.s32 %v903
  %v910 = vshll.u32 %v909, 16
  %v911 = vadd.s32 %v910, %v908
  %vm912 = vcmp.ge.s32.totalorder %v911, 5
  %v913 = vsel %vm912, 0, %v911
  %vm914 = vcmp.eq.s32.totalorder %v887, 1
  %v915 = vsel %vm914, 4294967295, %v913
  %vm916 = vcmp.eq.s32.totalorder %v889, 0
  %vm917 = vcmp.eq.s32.totalorder %v889, 1
  %918 = vset.pattern.permute.xlu0 0
  %919 = vperm.xlu0 %918, %v915
  %v920 = vpop.permute.xlu0 %919
  %v921 = vsel %vm917, %v920, 0
  %922 = vset.pattern.permute.xlu0 0
  %923 = vperm.xlu0 %922, %v887
  %v924 = vpop.permute.xlu0 %923
  %v925 = vsel %vm916, %v924, %v921
  %926 = vst [vmem:[%s2] sm:$0x3] %v925
  // Predicated region
  $region10: #{ood_classifier_forward.1} parent=0 // pred_check
    _
  $region11: #{ood_classifier_forward.1} parent=0 // pred_check_branch
    %928 = sbr.rel (0) target = $region13
  $region12: #{ood_classifier_forward.1} parent=0 // pred_region
    _
  $region13: #{ood_classifier_forward.1} parent=0 // pred_fallthru
    _
  // Predicated region
  $region14: #{ood_classifier_forward.1} parent=0 // pred_check
    _
  $region15: #{ood_classifier_forward.1} parent=0 // pred_check_branch
    %930 = sbr.rel (0) target = $region17
  $region16: #{ood_classifier_forward.1} parent=0 // pred_region
    _
  $region17: #{ood_classifier_forward.1} parent=0 // pred_fallthru
    _

</llo_original>
